<compile_context>
chip_gen: v7x
topology: tpu7x:2x2x1
jax: 0.10.0
libtpu: 0.0.40
codegen_flags: <defaults>
</compile_context>

<pallas_src>
import functools
import math

import jax
import jax.numpy as jnp
from jax.experimental import pallas as pl
from jax.experimental.pallas import tpu as pltpu


# ----------------------------------------------------------------------------
# Pallas kernel: one (batch, seq-tile) block per grid step.
#   ids_ref   : SMEM  [B, S]      int32   (scalar prefetch)
#   emb_hbm   : HBM   [V, H]              (memory_space=pl.ANY, manual DMA gather)
#   pe_ref    : VMEM  [tq, H]             (positional-encoding tile; zeros if unused)
#   g_ref/b_ref: VMEM [1, H]              (LayerNorm gamma / beta)
#   out_ref   : VMEM  [1, tq, H]
#   gbuf      : VMEM  [tq, H]             (gathered embedding rows)
#   sems      : DMA semaphores [tq]
# ----------------------------------------------------------------------------
def _embeddings_kernel(ids_ref, emb_hbm, pe_ref, g_ref, b_ref, out_ref,
                       gbuf, sems, *, tq):
    b = pl.program_id(0)
    t = pl.program_id(1)
    base = t * tq

    # Issue all row-gather DMAs for this tile, then wait for all of them.
    @pl.loop(0, tq)
    def _issue(i):
        tok = ids_ref[b, base + i]
        pltpu.make_async_copy(emb_hbm.at[pl.ds(tok, 1), :],
                              gbuf.at[pl.ds(i, 1), :],
                              sems.at[i]).start()

    @pl.loop(0, tq)
    def _wait(i):
        pltpu.make_async_copy(emb_hbm.at[pl.ds(0, 1), :],   # dummy src, same shape
                              gbuf.at[pl.ds(i, 1), :],
                              sems.at[i]).wait()

    x = gbuf[...].astype(jnp.float32) + pe_ref[...].astype(jnp.float32)

    # LayerNorm (biased variance, eps=1e-5) + affine, fused on the tile.
    mu = jnp.mean(x, axis=-1, keepdims=True)
    var = jnp.mean((x - mu) ** 2, axis=-1, keepdims=True)
    y = (x - mu) * jax.lax.rsqrt(var + 1e-5)
    y = y * g_ref[...].astype(jnp.float32) + b_ref[...].astype(jnp.float32)

    out_ref[0] = y.astype(out_ref.dtype)


# ----------------------------------------------------------------------------
# Wrapper
# ----------------------------------------------------------------------------
def embeddings_forward(token_ids, emb_table, pe, gamma, beta,
                       *, with_pos=True, tq=None):
    B, S = token_ids.shape
    V, H = emb_table.shape

    if tq is None:
        tq = min(S, 128)
    assert S % tq == 0, "seq length must be divisible by the query tile size"

    pe_s = pe[:S].astype(emb_table.dtype) if with_pos else \
        jnp.zeros((S, H), emb_table.dtype)
    gamma2 = gamma.reshape(1, H).astype(jnp.float32)
    beta2 = beta.reshape(1, H).astype(jnp.float32)

    kernel = functools.partial(_embeddings_kernel, tq=tq)

    return pl.pallas_call(
        kernel,
        out_shape=jax.ShapeDtypeStruct((B, S, H), emb_table.dtype),
        grid_spec=pltpu.PrefetchScalarGridSpec(
            num_scalar_prefetch=1,                 # token ids -> SMEM
            grid=(B, S // tq),
            in_specs=[
                pl.BlockSpec(memory_space=pl.ANY),                    # emb table (HBM)
                pl.BlockSpec((tq, H), lambda b, t, ids: (t, 0)),      # PE tile
                pl.BlockSpec((1, H), lambda b, t, ids: (0, 0)),       # gamma
                pl.BlockSpec((1, H), lambda b, t, ids: (0, 0)),       # beta
            ],
            out_specs=pl.BlockSpec((1, tq, H), lambda b, t, ids: (b, t, 0)),
            scratch_shapes=[
                pltpu.VMEM((tq, H), emb_table.dtype),   # gathered rows
                pltpu.SemaphoreType.DMA((tq,)),          # one sem per row DMA
            ],
        ),
        compiler_params=pltpu.CompilerParams(
            dimension_semantics=("parallel", "parallel")),
    )(token_ids.astype(jnp.int32), emb_table, pe_s, gamma2, beta2)


# ----------------------------------------------------------------------------
# Host-side positional-encoding table (registered buffer in PyTorch).
# ----------------------------------------------------------------------------
def positional_encoding(max_len, emb_size):
    pos = jnp.arange(max_len, dtype=jnp.float32)[:, None]
    div = jnp.exp(jnp.arange(0, emb_size, 2, dtype=jnp.float32)
                  * (-math.log(10000.0) / emb_size))
    pe = jnp.zeros((max_len, emb_size), jnp.float32)
    pe = pe.at[:, 0::2].set(jnp.sin(pos * div))
    pe = pe.at[:, 1::2].set(jnp.cos(pos * div))
    return pe


# ----------------------------------------------------------------------------
# Pure-JAX reference (same math) for a correctness check.
# ----------------------------------------------------------------------------
def reference_forward(token_ids, emb_table, pe, gamma, beta, with_pos=True):
    emb = emb_table[token_ids]                       # [B, S, H] gather
    if with_pos:
        emb = emb + pe[None, :emb.shape[1]]
    mu = jnp.mean(emb, axis=-1, keepdims=True)
    var = jnp.mean((emb - mu) ** 2, axis=-1, keepdims=True)
    return (emb - mu) * jax.lax.rsqrt(var + 1e-5) * gamma + beta


# ----------------------------------------------------------------------------
if __name__ == "__main__":
    B, S, H, V = 2, 8, 32, 64

    k1, k2, k3, k4 = jax.random.split(jax.random.PRNGKey(0), 4)

    token_ids = jax.random.randint(k1, (B, S), 0, V).astype(jnp.int32)
    emb_table = 0.1 * jax.random.normal(k2, (V, H), jnp.float32)
    emb_table = emb_table.at[1].set(0.0)    # padding_idx=1 row is zero at init
    pe = positional_encoding(S, H)
    gamma = 1.0 + 0.02 * jax.random.normal(k3, (H,), jnp.float32)
    beta = 0.02 * jax.random.normal(k4, (H,), jnp.float32)

    out = embeddings_forward(token_ids, emb_table, pe, gamma, beta,
                             with_pos=True)
    out = jax.block_until_ready(out)

    ref = reference_forward(token_ids, emb_table, pe, gamma, beta, True)
    max_err = float(jnp.max(jnp.abs(out - ref)))
    assert max_err < 1e-4, f"mismatch vs reference: {max_err}"
    print("KERNEL_OK")
</pallas_src>

<mosaic_0001>
module attributes {stable_mosaic.version = 11 : i64} {
  func.func @_embeddings_kernel(%arg0: i32, %arg1: i32, %arg2: memref<2x8xi32, #tpu.memory_space<smem>>, %arg3: memref<64x32xf32, #tpu.memory_space<any>>, %arg4: memref<8x32xf32, #tpu.memory_space<vmem>>, %arg5: memref<1x32xf32, #tpu.memory_space<vmem>>, %arg6: memref<1x32xf32, #tpu.memory_space<vmem>>, %arg7: memref<1x8x32xf32, #tpu.memory_space<vmem>>, %arg8: memref<8x32xf32, #tpu.memory_space<vmem>>, %arg9: memref<8x!tpu.dma_semaphore, #tpu.memory_space<semaphore_mem>>) attributes {dimension_semantics = [#tpu.dimension_semantics<parallel>, #tpu.dimension_semantics<parallel>], iteration_bounds = array<i64: 2, 1>, scalar_prefetch = 1 : i64, scratch_operands = 2 : i64, tpu.core_type = #tpu.core_type<tc>, window_params = [{}, {transform_indices = @transform_1, window_bounds = array<i64: 8, 32>}, {pipeline_mode = #tpu.pipeline_mode<synchronous>, transform_indices = @transform_2, window_bounds = array<i64: 1, 32>}, {pipeline_mode = #tpu.pipeline_mode<synchronous>, transform_indices = @transform_3, window_bounds = array<i64: 1, 32>}, {transform_indices = @transform_4, window_bounds = array<i64: 1, 8, 32>}]} {
    %c8_i32 = arith.constant 8 : i32
    %0 = arith.muli %arg1, %c8_i32 : i32
    %c0_i32 = arith.constant 0 : i32
    %c8_i32_0 = arith.constant 8 : i32
    %1 = arith.addi %c0_i32, %c8_i32_0 : i32
    %c1_i32 = arith.constant 1 : i32
    scf.for %arg10 = %c0_i32 to %1 step %c1_i32  : i32 {
      %c1_i32_20 = arith.constant 1 : i32
      %33 = arith.muli %arg10, %c1_i32_20 : i32
      %c0_i32_21 = arith.constant 0 : i32
      %34 = arith.addi %c0_i32_21, %33 : i32
      %35 = arith.addi %0, %34 : i32
      %36 = arith.index_cast %arg0 : i32 to index
      %37 = arith.index_cast %35 : i32 to index
      %38 = memref.load %arg2[%36, %37] : memref<2x8xi32, #tpu.memory_space<smem>>
      %c0_i32_22 = arith.constant 0 : i32
      %39 = tpu.memref_slice %arg3[%38, %c0_i32_22] : memref<64x32xf32, #tpu.memory_space<any>> -> memref<1x32xf32, #tpu.memory_space<any>>
      %c0_i32_23 = arith.constant 0 : i32
      %40 = tpu.memref_slice %arg8[%34, %c0_i32_23] : memref<8x32xf32, #tpu.memory_space<vmem>> -> memref<1x32xf32, #tpu.memory_space<vmem>>
      %41 = tpu.memref_slice %arg9[%34] : memref<8x!tpu.dma_semaphore, #tpu.memory_space<semaphore_mem>> -> memref<1x!tpu.dma_semaphore, #tpu.memory_space<semaphore_mem>>
      %42 = tpu.memref_squeeze %41 : memref<1x!tpu.dma_semaphore, #tpu.memory_space<semaphore_mem>> -> memref<!tpu.dma_semaphore, #tpu.memory_space<semaphore_mem>>
      tpu.enqueue_dma source(%39 : memref<1x32xf32, #tpu.memory_space<any>>) target(%40 : memref<1x32xf32, #tpu.memory_space<vmem>>) target_semaphore(%42 : memref<!tpu.dma_semaphore, #tpu.memory_space<semaphore_mem>>)
    }
    %c8_i32_1 = arith.constant 8 : i32
    %c0_i32_2 = arith.constant 0 : i32
    %c8_i32_3 = arith.constant 8 : i32
    %2 = arith.addi %c0_i32_2, %c8_i32_3 : i32
    %c1_i32_4 = arith.constant 1 : i32
    scf.for %arg10 = %c0_i32_2 to %2 step %c1_i32_4  : i32 {
      %c1_i32_20 = arith.constant 1 : i32
      %33 = arith.muli %arg10, %c1_i32_20 : i32
      %c0_i32_21 = arith.constant 0 : i32
      %34 = arith.addi %c0_i32_21, %33 : i32
      %c0_i32_22 = arith.constant 0 : i32
      %c0_i32_23 = arith.constant 0 : i32
      %35 = tpu.memref_slice %arg3[%c0_i32_22, %c0_i32_23] : memref<64x32xf32, #tpu.memory_space<any>> -> memref<1x32xf32, #tpu.memory_space<any>>
      %c0_i32_24 = arith.constant 0 : i32
      %36 = tpu.memref_slice %arg8[%34, %c0_i32_24] : memref<8x32xf32, #tpu.memory_space<vmem>> -> memref<1x32xf32, #tpu.memory_space<vmem>>
      %37 = tpu.memref_slice %arg9[%34] : memref<8x!tpu.dma_semaphore, #tpu.memory_space<semaphore_mem>> -> memref<1x!tpu.dma_semaphore, #tpu.memory_space<semaphore_mem>>
      %38 = tpu.memref_squeeze %37 : memref<1x!tpu.dma_semaphore, #tpu.memory_space<semaphore_mem>> -> memref<!tpu.dma_semaphore, #tpu.memory_space<semaphore_mem>>
      tpu.wait_dma2 semaphore(%38 : memref<!tpu.dma_semaphore, #tpu.memory_space<semaphore_mem>>) src(%35 : memref<1x32xf32, #tpu.memory_space<any>>) dst(%36 : memref<1x32xf32, #tpu.memory_space<vmem>>)
    }
    %c8_i32_5 = arith.constant 8 : i32
    %c0 = arith.constant 0 : index
    %c0_6 = arith.constant 0 : index
    %3 = vector.load %arg8[%c0, %c0_6] : memref<8x32xf32, #tpu.memory_space<vmem>>, vector<8x32xf32>
    %c0_7 = arith.constant 0 : index
    %c0_8 = arith.constant 0 : index
    %4 = vector.load %arg4[%c0_7, %c0_8] : memref<8x32xf32, #tpu.memory_space<vmem>>, vector<8x32xf32>
    %5 = arith.addf %3, %4 : vector<8x32xf32>
    %cst = arith.constant dense<0.000000e+00> : vector<8xf32>
    %6 = vector.multi_reduction <add>, %5, %cst [1] : vector<8x32xf32> to vector<8xf32>
    %7 = vector.shape_cast %6 : vector<8xf32> to vector<8x1xf32>
    %cst_9 = arith.constant 3.200000e+01 : f32
    %8 = vector.broadcast %cst_9 : f32 to vector<8x1xf32>
    %9 = arith.divf %7, %8 : vector<8x1xf32>
    %10 = vector.broadcast %9 : vector<8x1xf32> to vector<8x32xf32>
    %11 = arith.subf %5, %10 : vector<8x32xf32>
    %12 = arith.mulf %11, %11 : vector<8x32xf32>
    %cst_10 = arith.constant dense<0.000000e+00> : vector<8xf32>
    %13 = vector.multi_reduction <add>, %12, %cst_10 [1] : vector<8x32xf32> to vector<8xf32>
    %14 = vector.shape_cast %13 : vector<8xf32> to vector<8x1xf32>
    %cst_11 = arith.constant 3.200000e+01 : f32
    %15 = vector.broadcast %cst_11 : f32 to vector<8x1xf32>
    %16 = arith.divf %14, %15 : vector<8x1xf32>
    %17 = vector.broadcast %9 : vector<8x1xf32> to vector<8x32xf32>
    %18 = arith.subf %5, %17 : vector<8x32xf32>
    %cst_12 = arith.constant 9.99999974E-6 : f32
    %19 = vector.broadcast %cst_12 : f32 to vector<8x1xf32>
    %20 = arith.addf %16, %19 : vector<8x1xf32>
    %21 = math.rsqrt %20 : vector<8x1xf32>
    %22 = vector.broadcast %21 : vector<8x1xf32> to vector<8x32xf32>
    %23 = arith.mulf %18, %22 : vector<8x32xf32>
    %c0_13 = arith.constant 0 : index
    %c0_14 = arith.constant 0 : index
    %24 = vector.load %arg5[%c0_13, %c0_14] : memref<1x32xf32, #tpu.memory_space<vmem>>, vector<1x32xf32>
    %25 = vector.broadcast %24 : vector<1x32xf32> to vector<8x32xf32>
    %26 = arith.mulf %23, %25 : vector<8x32xf32>
    %c0_15 = arith.constant 0 : index
    %c0_16 = arith.constant 0 : index
    %27 = vector.load %arg6[%c0_15, %c0_16] : memref<1x32xf32, #tpu.memory_space<vmem>>, vector<1x32xf32>
    %28 = vector.broadcast %27 : vector<1x32xf32> to vector<8x32xf32>
    %29 = arith.addf %26, %28 : vector<8x32xf32>
    %c0_17 = arith.constant 0 : index
    %c0_18 = arith.constant 0 : index
    %c0_19 = arith.constant 0 : index
    %30 = vector.load %arg7[%c0_17, %c0_18, %c0_19] : memref<1x8x32xf32, #tpu.memory_space<vmem>>, vector<1x8x32xf32>
    %31 = vector.shape_cast %30 : vector<1x8x32xf32> to vector<8x32xf32>
    %32 = vector.shape_cast %29 : vector<8x32xf32> to vector<1x8x32xf32>
    tpu.vector_store %arg7[%c0_17, %c0_18, %c0_19], %32 {strides = array<i32>} : memref<1x8x32xf32, #tpu.memory_space<vmem>>, vector<1x8x32xf32>,
    return
  }
  func.func @transform_1(%arg0: i32, %arg1: i32, %arg2: memref<2x8xi32, #tpu.memory_space<smem>>) -> (i32, i32) {
    %c0_i32 = arith.constant 0 : i32
    %c0_i32_0 = arith.constant 0 : i32
    return %arg1, %c0_i32 : i32, i32
  }
  func.func @transform_2(%arg0: i32, %arg1: i32, %arg2: memref<2x8xi32, #tpu.memory_space<smem>>) -> (i32, i32) {
    %c0_i32 = arith.constant 0 : i32
    %c0_i32_0 = arith.constant 0 : i32
    %c0_i32_1 = arith.constant 0 : i32
    return %c0_i32, %c0_i32_0 : i32, i32
  }
  func.func @transform_3(%arg0: i32, %arg1: i32, %arg2: memref<2x8xi32, #tpu.memory_space<smem>>) -> (i32, i32) {
    %c0_i32 = arith.constant 0 : i32
    %c0_i32_0 = arith.constant 0 : i32
    %c0_i32_1 = arith.constant 0 : i32
    return %c0_i32, %c0_i32_0 : i32, i32
  }
  func.func @transform_4(%arg0: i32, %arg1: i32, %arg2: memref<2x8xi32, #tpu.memory_space<smem>>) -> (i32, i32, i32) {
    %c0_i32 = arith.constant 0 : i32
    %c0_i32_0 = arith.constant 0 : i32
    return %arg0, %arg1, %c0_i32 : i32, i32, i32
  }
}

</mosaic_0001>

<llo_original>
// kernel: tpu_custom_call.1
$region0: #{tpu_custom_call.1}
  #allocation0 [shape = 'u32[]', space=smem, size = 0x4, offset = 0x4, fixed_abs, tag = 'smem constant byte address 0x4 - core index']
  #allocation1 [shape = 'u32[144,128]{1,0:T(1,128)}', space=vmem, size = 0x12000, scoped, tag = 'internal scratch']
  #allocation2 [shape = 'f32[8,32]{1,0:T(8,128)}', space=vmem, size = 0x1000, scoped, tag = 'scratch operand']
  #allocation3 [shape = 's32[8]{0}', space=sflag, size = 0x20, scoped, tag = 'scratch operand']
  #allocation4 [shape = 's32[1]{0}', space=sflag, size = 0x4, scoped, tag = 'scoped memory for tpu_custom_call.1']
  #allocation5 [shape = 'u8[1024]{0}', space=smem, size = 0x400, scoped, tag = 'prefetched SMEM operand 0']
  #allocation8 [shape = 's32[]', space=sflag, size = 0x4, offset = 0, fixed_abs, tag = 'sflag constant byte address 0x0 - dummy sync flag']
  %s0 = inlined_call_operand.vmem [shape: s32[2,8], index: 0, kind: input, shape index: {}]
  %s1 = inlined_call_operand.vmem [shape: f32[64,32], index: 1, kind: input, shape index: {}]
  %s2 = inlined_call_operand.vmem [shape: f32[8,32], index: 2, kind: input, shape index: {}]
  %s3 = inlined_call_operand.vmem [shape: f32[1,32], index: 3, kind: input, shape index: {}]
  %s4 = inlined_call_operand.vmem [shape: f32[1,32], index: 4, kind: input, shape index: {}]
  %s5 = inlined_call_operand.hbm [shape: f32[2,8,32], index: 5, kind: output, shape index: {}]
  %s6 = sld [smem:[#allocation0]]
  $region89: #{tpu_custom_call.1} parent=0
    _
  %s8 = ssub.s32 1, %s6
  %s9 = scalar_select 0, %s8, %s6
  %s10 = sshll.u32 %s0, 4
  %s11 = int_to_ptr.vmem [resolvable:$true] %s10
  %13 = dma.vmem_to_smem %s11, 32, [#allocation5], [#allocation4]
  %14 = dma.done [#allocation4], 32
  %15 = sfence
  $region1: #{tpu_custom_call.1} parent=0
    #allocation6 [shape = 'u8[8192]{0}', space=vmem, size = 0x2000, scoped, tag = 'output window, operand 0']
    #allocation7 [shape = 's32[2]{0}', space=sflag, size = 0x8, scoped, tag = 'scoped memory for tpu_custom_call.1']
    %16 = vsyncpa [#allocation7], 0
    %s17 = scalar_lea.sflag [#allocation7], 1
    %18 = vsyncpa %s17, 0
    loop: start=0, step=1, limit=4
    $region2: #{tpu_custom_call.1} parent=1 // loop_pre_header
      _
    $region3: #{tpu_custom_call.1} parent=1 // loop_header
      %s20 = sphi 0, %s24
      %p21 = scmp.ge.s32.totalorder %s20, 4
      %s27 = sphi 0, %s39
      %s28 = sphi 0, %s35
      %s29 = sphi 0, %s27
      %s30 = sphi 0, %s28
      %s31 = sphi 0, %s29
      %s32 = sphi 0, %s30
      %s42 = sphi 0, %s44
      %s45 = sphi 0, %s42
      %s46 = sphi 0, %s45
      %s62 = sphi 0, %s46
      %s66 = sphi 0, %s66
      %s68 = sphi 0, %s66
      %s69 = sphi 0, %s68
      %s83 = sphi 0, %s69
      %s87 = sphi 0, %s87
      %s89 = sphi 0, %s87
      %s90 = sphi 0, %s89
      %s104 = sphi 0, %s90
      %s112 = sphi 0, %s114
      %s115 = sphi 0, %s112
      %s116 = sphi 0, %s115
      %s132 = sphi 0, %s116
    $region4: #{tpu_custom_call.1} parent=1 // loop_header_branch
      %23 = sbr.rel (%p21) target = $region8
    $region5: #{tpu_custom_call.1} parent=1 // loop_body
      %s25 = ssub.s32 %s20, 1
      %s26 = ssub.s32 %s20, 2
      %s33 = sadd.s32 1, %s28
      %p34 = scmp.ge.s32.totalorder %s33, 1
      %s35 = scalar_select %p34, 0, %s33
      %s36 = sadd.s32 1, %s27
      %s37 = scalar_select %p34, %s36, %s27
      %p38 = scmp.ge.s32.totalorder %s37, 2
      %s39 = scalar_select %p38, 0, %s37
      %s40 = ssub.s32 %s28, %s35
      %p41 = scmp.eq.s32.totalorder %s40, 0
      %s43 = sadd.s32 %s42, 1
      %s44 = scalar_select %p41, %s42, %s43
      %p47 = pneg %p41
      %p48 = scmp.eq.s32.totalorder %s20, 1
      %p49 = por %p47, %p48
      %p50 = scmp.ne.s32.totalorder %s42, %s45
      %p51 = scmp.eq.s32.totalorder %s20, 0
      %p52 = por %p50, %p51
      %p53 = scmp.ne.s32.totalorder %s42, %s45
      %p54 = scmp.eq.s32.totalorder %s25, 1
      %p55 = por %p53, %p54
      %p56 = scmp.ne.s32.totalorder %s45, %s46
      %p57 = scmp.eq.s32.totalorder %s25, 0
      %p58 = por %p56, %p57
      %p59 = scmp.ne.s32.totalorder %s45, %s46
      %p60 = scmp.eq.s32.totalorder %s26, 1
      %p61 = por %p59, %p60
      %p63 = scmp.ne.s32.totalorder %s46, %s62
      %p64 = scmp.eq.s32.totalorder %s26, 0
      %p65 = por %p63, %p64
      %s67 = sadd.s32 %s66, 1
      %p70 = scmp.eq.s32.totalorder %s20, 1
      %p71 = scmp.ne.s32.totalorder %s66, %s68
      %p72 = scmp.eq.s32.totalorder %s20, 0
      %p73 = por %p71, %p72
      %p74 = scmp.ne.s32.totalorder %s66, %s68
      %p75 = scmp.eq.s32.totalorder %s25, 1
      %p76 = por %p74, %p75
      %p77 = scmp.ne.s32.totalorder %s68, %s69
      %p78 = scmp.eq.s32.totalorder %s25, 0
      %p79 = por %p77, %p78
      %p80 = scmp.ne.s32.totalorder %s68, %s69
      %p81 = scmp.eq.s32.totalorder %s26, 1
      %p82 = por %p80, %p81
      %p84 = scmp.ne.s32.totalorder %s69, %s83
      %p85 = scmp.eq.s32.totalorder %s26, 0
      %p86 = por %p84, %p85
      %s88 = sadd.s32 %s87, 1
      %p91 = scmp.eq.s32.totalorder %s20, 1
      %p92 = scmp.ne.s32.totalorder %s87, %s89
      %p93 = scmp.eq.s32.totalorder %s20, 0
      %p94 = por %p92, %p93
      %p95 = scmp.ne.s32.totalorder %s87, %s89
      %p96 = scmp.eq.s32.totalorder %s25, 1
      %p97 = por %p95, %p96
      %p98 = scmp.ne.s32.totalorder %s89, %s90
      %p99 = scmp.eq.s32.totalorder %s25, 0
      %p100 = por %p98, %p99
      %p101 = scmp.ne.s32.totalorder %s89, %s90
      %p102 = scmp.eq.s32.totalorder %s26, 1
      %p103 = por %p101, %p102
      %p105 = scmp.ne.s32.totalorder %s90, %s104
      %p106 = scmp.eq.s32.totalorder %s26, 0
      %p107 = por %p105, %p106
      %s108 = ssub.s32 %s27, %s39
      %s109 = ssub.s32 %s28, %s35
      %s110 = sor.u32 %s108, %s109
      %p111 = scmp.eq.s32.totalorder %s110, 0
      %s113 = sadd.s32 %s112, 1
      %s114 = scalar_select %p111, %s112, %s113
      %p117 = pneg %p111
      %p118 = scmp.eq.s32.totalorder %s20, 1
      %p119 = por %p117, %p118
      %p120 = scmp.ne.s32.totalorder %s112, %s115
      %p121 = scmp.eq.s32.totalorder %s20, 0
      %p122 = por %p120, %p121
      %p123 = scmp.ne.s32.totalorder %s112, %s115
      %p124 = scmp.eq.s32.totalorder %s25, 1
      %p125 = por %p123, %p124
      %p126 = scmp.ne.s32.totalorder %s115, %s116
      %p127 = scmp.eq.s32.totalorder %s25, 0
      %p128 = por %p126, %p127
      %p129 = scmp.ne.s32.totalorder %s115, %s116
      %p130 = scmp.eq.s32.totalorder %s26, 1
      %p131 = por %p129, %p130
      %p133 = scmp.ne.s32.totalorder %s116, %s132
      %p134 = scmp.eq.s32.totalorder %s26, 0
      %p135 = por %p133, %p134
      %p136 = scmp.le.s32.totalorder 1, %s20
      %p137 = scmp.lt.s32.totalorder %s20, 3
      %p138 = pnand %p136, %p137
      %p139 = pneg %p138
      // Predicated region
      $region9: #{tpu_custom_call.1} parent=5 // pred_check
        _
      $region10: #{tpu_custom_call.1} parent=5 // pred_check_branch
        %141 = sbr.rel (%p138) target = $region12
      $region11: #{tpu_custom_call.1} parent=5 // pred_region
        %s142 = ssub.s32 %s20, 1
        // Predicated region
        $region13: #{tpu_custom_call.1} parent=11 // pred_check
          %p143 = pneg %p58
        $region14: #{tpu_custom_call.1} parent=11 // pred_check_branch
          %145 = sbr.rel (%p143) target = $region16
        $region15: #{tpu_custom_call.1} parent=11 // pred_region
          %p146 = scmp.lt.s32.totalorder %s30, 0
          %s147 = scalar_select %p146, %s30, 0
          %s148 = smul.addr %s147, 8
          %s149 = scalar_lea.vmem %s2, %s148
        $region16: #{tpu_custom_call.1} parent=11 // pred_fallthru
          _
        // Predicated region
        $region17: #{tpu_custom_call.1} parent=11 // pred_check
          %p150 = pneg %p79
        $region18: #{tpu_custom_call.1} parent=11 // pred_check_branch
          %152 = sbr.rel (%p150) target = $region20
        $region19: #{tpu_custom_call.1} parent=11 // pred_region
          _
        $region20: #{tpu_custom_call.1} parent=11 // pred_fallthru
          _
        // Predicated region
        $region21: #{tpu_custom_call.1} parent=11 // pred_check
          %p153 = pneg %p100
        $region22: #{tpu_custom_call.1} parent=11 // pred_check_branch
          %155 = sbr.rel (%p153) target = $region24
        $region23: #{tpu_custom_call.1} parent=11 // pred_region
          _
        $region24: #{tpu_custom_call.1} parent=11 // pred_fallthru
          _
      $region12: #{tpu_custom_call.1} parent=5 // pred_fallthru
        _
      %p156 = scmp.lt.s32.totalorder %s20, 2
      // Predicated region
      $region25: #{tpu_custom_call.1} parent=5 // pred_check
        %p157 = pneg %p156
      $region26: #{tpu_custom_call.1} parent=5 // pred_check_branch
        %159 = sbr.rel (%p157) target = $region28
      $region27: #{tpu_custom_call.1} parent=5 // pred_region
        _
      $region28: #{tpu_custom_call.1} parent=5 // pred_fallthru
        _
      %p160 = scmp.le.s32.totalorder 1, %s20
      %p161 = scmp.lt.s32.totalorder %s20, 3
      %p162 = pnand %p160, %p161
      %p163 = pneg %p162
      // Predicated region
      $region29: #{tpu_custom_call.1} parent=5 // pred_check
        _
      $region30: #{tpu_custom_call.1} parent=5 // pred_check_branch
        %165 = sbr.rel (%p162) target = $region32
      $region31: #{tpu_custom_call.1} parent=5 // pred_region
        %s166 = ssub.s32 %s20, 1
        %p167 = scmp.lt.s32.totalorder %s30, 0
        %s168 = scalar_select %p167, %s30, 0
        %s169 = smul.addr %s168, 8
        %s170 = scalar_lea.vmem %s2, %s169
        %p171 = pneg %p58
        %p172 = pneg %p55
        %p173 = pneg %p79
        %p174 = pneg %p76
        %p175 = pneg %p100
        %p176 = pneg %p97
        %p177 = pneg %p128
        %p178 = pneg %p125
        %s179 = sand.u32 %s115, 1
        %s180 = scalar_lea.sflag [#allocation7], %s179
        %s181 = sand.u32 %s115, 1
        %s182 = smul.addr %s181, 8
        %s183 = scalar_lea.vmem [#allocation6], %s182
        %p184 = scmp.lt.s32.totalorder %s30, 0
        %s185 = scalar_select %p184, %s30, 0
        %s186 = smul.addr %s185, 8
        %s187 = scalar_lea.vmem %s2, %s186
        %s188 = smul.u32 %s30, 8
        loop: start=0, step=1, limit=8
        $region33: #{tpu_custom_call.1} parent=31 // loop_pre_header
          _
        $region34: #{tpu_custom_call.1} parent=31 // loop_header
          %s190 = sphi 0, %s194
          %p191 = scmp.ge.s32.totalorder %s190, 8
        $region35: #{tpu_custom_call.1} parent=31 // loop_header_branch
          %193 = sbr.rel (%p191) target = $region39
        $region36: #{tpu_custom_call.1} parent=31 // loop_body
          %s195 = sadd.s32 %s188, %s190
          %s196 = sshra.s32 %s195, 7
          %s197 = sand.u32 %s195, 127
          %s198 = sadd.s32 %s196, %s29
          %s199 = smul.u32 %s198, 128
          %s200 = sshra.s32 %s195, 7
          %s201 = sand.u32 %s195, 127
          %s202 = sadd.s32 %s199, %s201
          %s203 = sld [smem:[#allocation5 + %s202]]
          %s204 = scalar_lea.vmem %s1, %s203
          %s205 = scalar_lea.vmem [#allocation2], %s190
          %s206 = scalar_lea.sflag [#allocation3], %s190
          %p208 = scmp.lt.u32.totalorder 1, 8
          %p209 = pneg %p208
          // Predicated region
          $region40: #{tpu_custom_call.1} parent=36 // pred_check
            _
          $region41: #{tpu_custom_call.1} parent=36 // pred_check_branch
            %211 = sbr.rel (%p208) target = $region43
          $region42: #{tpu_custom_call.1} parent=36 // pred_region
            %s226 = sand.u32 1, 7
            %p227 = scmp.eq.s32.totalorder %s226, 0
            %p228 = pneg %p227
            // Predicated region
            $region55: #{tpu_custom_call.1} parent=42 // pred_check
              _
            $region56: #{tpu_custom_call.1} parent=42 // pred_check_branch
              %230 = sbr.rel (%p227) target = $region58
            $region57: #{tpu_custom_call.1} parent=42 // pred_region
              %s231 = sand.u32 1, 7
              %s232 = ssub.s32 1, %s231
              %s233 = scalar_lea.vmem %s204, %s232
              %s234 = ssub.s32 1, %s231
              %s235 = scalar_lea.vmem %s205, %s234 [#allocation2]
              %s236 = sshllo.u32 0, %s231
              loop: start=0, step=1, limit=1
              $region59: #{tpu_custom_call.1} parent=57 // loop_pre_header
                _
              $region60: #{tpu_custom_call.1} parent=57 // loop_header
                %s238 = sphi 0, %s242
                %p239 = scmp.ge.s32.totalorder %s238, 1
                %s243 = sphi %s233, %s233
                %s244 = sphi %s235, %s235
              $region61: #{tpu_custom_call.1} parent=57 // loop_header_branch
                %241 = sbr.rel (%p239) target = $region65
              $region62: #{tpu_custom_call.1} parent=57 // loop_body
                %v245 = vld [vmem:[%s243] sm:%s236]
                %246 = vst [vmem:[%s244] sm:%s236] %v245
              $region63: #{tpu_custom_call.1} parent=57 // loop_footer
                %s242 = sadd.s32 1, %s238
              $region64: #{tpu_custom_call.1} parent=57 // loop_footer_branch
                %237 = sbr.rel target = $region60
              $region65: #{tpu_custom_call.1} parent=57 // loop_exit
                _
            $region58: #{tpu_custom_call.1} parent=42 // pred_fallthru
              _
          $region43: #{tpu_custom_call.1} parent=36 // pred_fallthru
            _
          // Predicated region
          $region44: #{tpu_custom_call.1} parent=36 // pred_check
            %p212 = pneg %p208
          $region45: #{tpu_custom_call.1} parent=36 // pred_check_branch
            %214 = sbr.rel (%p212) target = $region47
          $region46: #{tpu_custom_call.1} parent=36 // pred_region
            %s215 = sshllo.u32 0, 1
            loop: start=0, step=1, limit=1
            $region48: #{tpu_custom_call.1} parent=46 // loop_pre_header
              _
            $region49: #{tpu_custom_call.1} parent=46 // loop_header
              %s217 = sphi 0, %s221
              %p218 = scmp.ge.s32.totalorder %s217, 1
              %s222 = sphi %s204, %s204
              %s223 = sphi %s205, %s205
            $region50: #{tpu_custom_call.1} parent=46 // loop_header_branch
              %220 = sbr.rel (%p218) target = $region54
            $region51: #{tpu_custom_call.1} parent=46 // loop_body
              %v224 = vld [vmem:[%s222] sm:%s215]
              %225 = vst [vmem:[%s223] sm:%s215] %v224
            $region52: #{tpu_custom_call.1} parent=46 // loop_footer
              %s221 = sadd.s32 1, %s217
            $region53: #{tpu_custom_call.1} parent=46 // loop_footer_branch
              %216 = sbr.rel target = $region49
            $region54: #{tpu_custom_call.1} parent=46 // loop_exit
              _
          $region47: #{tpu_custom_call.1} parent=36 // pred_fallthru
            _
          // Predicated region
          $region66: #{tpu_custom_call.1} parent=36 // pred_check
            _
          $region67: #{tpu_custom_call.1} parent=36 // pred_check_branch
            %249 = sbr.rel (0) target = $region69
          $region68: #{tpu_custom_call.1} parent=36 // pred_region
            %250 = vsyncadd %s206, 16
          $region69: #{tpu_custom_call.1} parent=36 // pred_fallthru
            _
        $region37: #{tpu_custom_call.1} parent=31 // loop_footer
          %s194 = sadd.s32 1, %s190
        $region38: #{tpu_custom_call.1} parent=31 // loop_footer_branch
          %189 = sbr.rel target = $region34
        $region39: #{tpu_custom_call.1} parent=31 // loop_exit
          _
        loop: start=0, step=1, limit=8
        $region70: #{tpu_custom_call.1} parent=31 // loop_pre_header
          _
        $region71: #{tpu_custom_call.1} parent=31 // loop_header
          %s252 = sphi 0, %s256
          %p253 = scmp.ge.s32.totalorder %s252, 8
        $region72: #{tpu_custom_call.1} parent=31 // loop_header_branch
          %255 = sbr.rel (%p253) target = $region76
        $region73: #{tpu_custom_call.1} parent=31 // loop_body
          %s257 = scalar_lea.sflag [#allocation3], %s252
          %s258 = smul.u32 1, 1
          %s259 = sshll.u32 %s258, 4
          %260 = dma.done %s257, %s259
        $region74: #{tpu_custom_call.1} parent=31 // loop_footer
          %s256 = sadd.s32 1, %s252
        $region75: #{tpu_custom_call.1} parent=31 // loop_footer_branch
          %251 = sbr.rel target = $region71
        $region76: #{tpu_custom_call.1} parent=31 // loop_exit
          _
        %v261 = vld [vmem:[#allocation2] sm:$0xff]
        %v262 = vld [vmem:[%s187] sm:$0xff]
        %v263 = vadd.f32 %v261, %v262
        %vm264 = vcmask 261120
        %v265 = vsel %vm264, %v263, 0.0
        %266 = vadd.xlane.f32.xlu0 %v265
        %v267 = vpop.xlane.xlu0 %266
        %v268 = vrcp.pop 32.0
        %v269 = vmul.f32 %v267, %v268
        %v270 = vsub.f32 %v263, %v269
        %v271 = vmul.f32 %v270, %v270
        %v272 = vsel %vm264, %v271, 0.0
        %273 = vadd.xlane.f32.xlu0 %v272
        %v274 = vpop.xlane.xlu0 %273
        %v275 = vmul.f32 %v274, %v268
        %v276 = vadd.f32 %v275, 1e-05
        %v277 = vrsqrt.pop %v276
        %v278 = vmul.f32 %v270, %v277
        %v279 = vld [vmem:[%s3] sm:$0x1]
        %v281 = vlaneseq
        %v282 = vshrl.u32 %v281, 7
        %v283 = vsub.s32 0, %v282
        %v284 = vrot.slane %v279, %v283
        %v286 = vmul.f32 %v278, %v284
        %v287 = vld [vmem:[%s4] sm:$0x1]
        %v289 = vlaneseq
        %v290 = vshrl.u32 %v289, 7
        %v291 = vsub.s32 0, %v290
        %v292 = vrot.slane %v287, %v291
        %v294 = vadd.f32 %v286, %v292
        %295 = vst.msk [vmem:[%s183] sm:$0xff] %vm264, %v294
        %s296 = sand.u32 %s115, 1
        %s297 = scalar_lea.sflag [#allocation7], %s296
        %s298 = sand.u32 %s115, 1
        %s299 = smul.addr %s298, 8
        %s300 = scalar_lea.vmem [#allocation6], %s299
        // Predicated region
        $region77: #{tpu_custom_call.1} parent=31 // pred_check
          %p301 = pneg %p125
        $region78: #{tpu_custom_call.1} parent=31 // pred_check_branch
          %303 = sbr.rel (%p301) target = $region80
        $region79: #{tpu_custom_call.1} parent=31 // pred_region
          %s305 = ssub.s32 128, 128
          %306 = vsyncadd %s297, %s305
          %s307 = sadd.s32 %s30, %s29
          %s308 = smul.addr %s307, 128
          %s309 = scalar_lea.hbm %s5, %s308
          %s311 = sshll.u32 %s300, 4
          %s312 = int_to_ptr.vmem [resolvable:$true] %s311
          %314 = dma.vmem_to_hbm [thread:$0]  %s312, 128, %s309, %s297
        $region80: #{tpu_custom_call.1} parent=31 // pred_fallthru
          _
      $region32: #{tpu_custom_call.1} parent=5 // pred_fallthru
        _
      %p315 = scmp.le.s32.totalorder 2, %s20
      // Predicated region
      $region81: #{tpu_custom_call.1} parent=5 // pred_check
        %p316 = pneg %p315
      $region82: #{tpu_custom_call.1} parent=5 // pred_check_branch
        %318 = sbr.rel (%p316) target = $region84
      $region83: #{tpu_custom_call.1} parent=5 // pred_region
        %s319 = ssub.s32 %s20, 2
        // Predicated region
        $region85: #{tpu_custom_call.1} parent=83 // pred_check
          %p320 = pneg %p131
        $region86: #{tpu_custom_call.1} parent=83 // pred_check_branch
          %322 = sbr.rel (%p320) target = $region88
        $region87: #{tpu_custom_call.1} parent=83 // pred_region
          %s323 = sand.u32 %s116, 1
          %s324 = scalar_lea.sflag [#allocation7], %s323
          %s325 = sand.u32 %s116, 1
          %s326 = smul.addr %s325, 8
          %s327 = scalar_lea.vmem [#allocation6], %s326
          %328 = dma.done %s324, 128
        $region88: #{tpu_custom_call.1} parent=83 // pred_fallthru
          _
      $region84: #{tpu_custom_call.1} parent=5 // pred_fallthru
        _
    $region6: #{tpu_custom_call.1} parent=1 // loop_footer
      %s24 = sadd.s32 1, %s20
    $region7: #{tpu_custom_call.1} parent=1 // loop_footer_branch
      %19 = sbr.rel target = $region3
    $region8: #{tpu_custom_call.1} parent=1 // loop_exit
      _
    %329 = vsyncpa [#allocation7], 1
    %s330 = scalar_lea.sflag [#allocation7], 1
    %331 = vsyncpa %s330, 1
  %332 = vsyncmov [#allocation3]
  %s333 = vpop.sfrf %332
  %p334 = scmp.eq.s32.totalorder %s333, 0
  %p335 = pneg %p334
  %337 = shalt.err (%p335)
  %s338 = scalar_lea.sflag [#allocation3], 1
  %339 = vsyncmov %s338
  %s340 = vpop.sfrf %339
  %p341 = scmp.eq.s32.totalorder %s340, 0
  %p342 = pneg %p341
  %344 = shalt.err (%p342)
  %s345 = scalar_lea.sflag [#allocation3], 2
  %346 = vsyncmov %s345
  %s347 = vpop.sfrf %346
  %p348 = scmp.eq.s32.totalorder %s347, 0
  %p349 = pneg %p348
  %351 = shalt.err (%p349)
  %s352 = scalar_lea.sflag [#allocation3], 3
  %353 = vsyncmov %s352
  %s354 = vpop.sfrf %353
  %p355 = scmp.eq.s32.totalorder %s354, 0
  %p356 = pneg %p355
  %358 = shalt.err (%p356)
  %s359 = scalar_lea.sflag [#allocation3], 4
  %360 = vsyncmov %s359
  %s361 = vpop.sfrf %360
  %p362 = scmp.eq.s32.totalorder %s361, 0
  %p363 = pneg %p362
  %365 = shalt.err (%p363)
  %s366 = scalar_lea.sflag [#allocation3], 5
  %367 = vsyncmov %s366
  %s368 = vpop.sfrf %367
  %p369 = scmp.eq.s32.totalorder %s368, 0
  %p370 = pneg %p369
  %372 = shalt.err (%p370)
  %s373 = scalar_lea.sflag [#allocation3], 6
  %374 = vsyncmov %s373
  %s375 = vpop.sfrf %374
  %p376 = scmp.eq.s32.totalorder %s375, 0
  %p377 = pneg %p376
  %379 = shalt.err (%p377)
  %s380 = scalar_lea.sflag [#allocation3], 7
  %381 = vsyncmov %s380
  %s382 = vpop.sfrf %381
  %p383 = scmp.eq.s32.totalorder %s382, 0
  %p384 = pneg %p383
  %386 = shalt.err (%p384)

</llo_original>
